<compile_context>
chip_gen: v7x
topology: tpu7x:2x2x1
jax: 0.10.0
libtpu: 0.0.40
codegen_flags: <defaults>
</compile_context>

<pallas_src>
import functools

import jax
import jax.numpy as jnp
from jax.experimental import pallas as pl
from jax.experimental.pallas import tpu as pltpu


def _conv_relu_kernel(x_ref, w_ref, b_ref, o_ref, acc_ref):
    """One (batch, spatial-tile, K-tile) grid step.

    x_ref:   (tk, ts)     im2col patch block (K chunk x spatial chunk)
    w_ref:   (C_out, tk)  weight chunk
    b_ref:   (C_out, 1)   bias
    o_ref:   (C_out, ts)  lane-dense output tile (ts multiple of 128)
    acc_ref: (C_out, ts)  f32 accumulator (VMEM scratch)
    """
    q = pl.program_id(2)

    @pl.when(q == 0)
    def _():
        acc_ref[...] = jnp.zeros_like(acc_ref)

    acc_ref[...] += jnp.dot(
        w_ref[...], x_ref[...], preferred_element_type=jnp.float32
    )

    @pl.when(q == pl.num_programs(2) - 1)
    def _():
        o_ref[...] = jnp.maximum(acc_ref[...] + b_ref[...], 0.0).astype(o_ref.dtype)


def _im2col_nchw(x, k, s, ho, wo):
    """x: (N, C, H, W) -> patches (N, C*k*k, Ho*Wo), spatial last (lane axis)."""
    n, c, h, w = x.shape
    if k == 1:
        # 1x1 conv: im2col is just a (strided) view + reshape, no duplication.
        return x[:, :, : s * ho : s, : s * wo : s].reshape(n, c, ho * wo)
    rows = []
    for ki in range(k):
        cols = [x[:, :, ki : ki + s * ho : s, kj : kj + s * wo : s] for kj in range(k)]
        rows.append(jnp.stack(cols, axis=2))        # (N, C, k_j, Ho, Wo)
    patches = jnp.stack(rows, axis=2)               # (N, C, k_i, k_j, Ho, Wo)
    # patches[n, c, ki, kj, ho, wo] == x[n, c, ho*s + ki, wo*s + kj]
    return patches.reshape(n, c * k * k, ho * wo)


@functools.partial(jax.jit, static_argnames=("k", "s"))
def conv_relu(x, weight, bias, *, k=1, s=1):
    """ReLU(Conv2d(c1, c2, k, s)(x)) for NCHW input x.

    x:      (N, C_in, H, W)
    weight: (C_out, C_in, k, k)   (PyTorch OIHW layout)
    bias:   (C_out,)
    returns (N, C_out, Ho, Wo)
    """
    n, c_in, h, w = x.shape
    c_out = weight.shape[0]
    ho = (h - k) // s + 1
    wo = (w - k) // s + 1

    patches = _im2col_nchw(x, k, s, ho, wo)          # (N, K, S)
    kk = c_in * k * k
    s_total = ho * wo

    w_mat = weight.reshape(c_out, kk)                # (C_out, K)
    b_mat = bias.reshape(c_out, 1)                   # (C_out, 1)

    # --- tiling -----------------------------------------------------------
    # K (reduction) tile: full K when small, else 512-wide chunks.
    tk = kk if kk <= 512 else 512
    k_pad = pl.cdiv(kk, tk) * tk
    # Spatial (lane) tile: multiple of 128, capped so double-buffered blocks
    # stay far under the v7x 64 MiB VMEM budget (tk*ts*4B <= 4 MiB per buffer).
    s_128 = ((s_total + 127) // 128) * 128
    ts = s_128 if s_128 <= 4096 else 2048
    s_pad = pl.cdiv(s_total, ts) * ts

    if k_pad != kk:
        patches = jnp.pad(patches, ((0, 0), (0, k_pad - kk), (0, 0)))
        w_mat = jnp.pad(w_mat, ((0, 0), (0, k_pad - kk)))
    if s_pad != s_total:
        patches = jnp.pad(patches, ((0, 0), (0, 0), (0, s_pad - s_total)))

    grid = (n, s_pad // ts, k_pad // tk)
    itemsize = jnp.dtype(x.dtype).itemsize
    cost = pl.CostEstimate(
        flops=2 * n * s_total * kk * c_out,
        transcendentals=0,
        bytes_accessed=(patches.size + w_mat.size + b_mat.size) * itemsize
        + n * c_out * s_pad * itemsize,
    )

    out = pl.pallas_call(
        _conv_relu_kernel,
        out_shape=jax.ShapeDtypeStruct((n, c_out, s_pad), x.dtype),
        grid_spec=pltpu.PrefetchScalarGridSpec(
            num_scalar_prefetch=0,
            grid=grid,
            in_specs=[
                # patches: batch squeezed, (K chunk, spatial chunk)
                pl.BlockSpec((None, tk, ts), lambda b, j, q: (b, q, j)),
                # weight chunk: resident across batch/spatial, streams over K
                pl.BlockSpec((c_out, tk), lambda b, j, q: (0, q)),
                # bias: fully resident
                pl.BlockSpec((c_out, 1), lambda b, j, q: (0, 0)),
            ],
            # output block index is constant over the K axis -> accumulator
            # stays resident; written once at the last K step.
            out_specs=pl.BlockSpec((None, c_out, ts), lambda b, j, q: (b, 0, j)),
            scratch_shapes=[pltpu.VMEM((c_out, ts), jnp.float32)],
        ),
        compiler_params=pltpu.CompilerParams(
            dimension_semantics=("parallel", "parallel", "arbitrary"),
        ),
        cost_estimate=cost,
    )(patches, w_mat, b_mat)

    # (N, C_out, S_pad) -> drop lane padding -> NCHW, no transpose needed.
    return out[:, :, :s_total].reshape(n, c_out, ho, wo)


if __name__ == "__main__":
    key = jax.random.PRNGKey(0)
    kx, kw, kb = jax.random.split(key, 3)

    # Module config: ConvReLU(c1=4, c2=8, k=1, s=1, act=True), NCHW input.
    c1, c2, k, s = 4, 8, 1, 1
    x = jax.random.normal(kx, (2, c1, 16, 16), dtype=jnp.float32)
    weight = jax.random.normal(kw, (c2, c1, k, k), dtype=jnp.float32) * 0.1
    bias = jax.random.normal(kb, (c2,), dtype=jnp.float32) * 0.1

    out = conv_relu(x, weight, bias, k=k, s=s)
    jax.block_until_ready(out)

    ref = jax.lax.conv_general_dilated(
        x, weight, window_strides=(s, s), padding="VALID",
        dimension_numbers=("NCHW", "OIHW", "NCHW"),
    ) + bias.reshape(1, c2, 1, 1)
    ref = jnp.maximum(ref, 0.0)
    assert out.shape == ref.shape == (2, c2, 16, 16)
    # Tolerance accommodates default-precision (bf16-pass) MXU matmul/conv on
    # real TPUs; a layout bug would produce O(1) mismatches and still fail.
    assert jnp.allclose(out, ref, atol=1e-2, rtol=1e-2), float(
        jnp.max(jnp.abs(out - ref))
    )

    # Also exercise the general k>1 / strided im2col path (k=3, s=2).
    k2, s2 = 3, 2
    w2 = jax.random.normal(kw, (c2, c1, k2, k2), dtype=jnp.float32) * 0.1
    out2 = conv_relu(x, w2, bias, k=k2, s=s2)
    jax.block_until_ready(out2)
    ref2 = jax.lax.conv_general_dilated(
        x, w2, window_strides=(s2, s2), padding="VALID",
        dimension_numbers=("NCHW", "OIHW", "NCHW"),
    ) + bias.reshape(1, c2, 1, 1)
    ref2 = jnp.maximum(ref2, 0.0)
    assert jnp.allclose(out2, ref2, atol=1e-2, rtol=1e-2), float(
        jnp.max(jnp.abs(out2 - ref2))
    )

    print("KERNEL_OK")
</pallas_src>

<mosaic_0001>
module attributes {stable_mosaic.version = 11 : i64} {
  func.func @_conv_relu_kernel(%arg0: i32, %arg1: i32, %arg2: i32, %arg3: memref<1x4x256xf32, #tpu.memory_space<vmem>>, %arg4: memref<8x4xf32, #tpu.memory_space<vmem>>, %arg5: memref<8x1xf32, #tpu.memory_space<vmem>>, %arg6: memref<1x8x256xf32, #tpu.memory_space<vmem>>, %arg7: memref<8x256xf32, #tpu.memory_space<vmem>>) attributes {dimension_semantics = [#tpu.dimension_semantics<parallel>, #tpu.dimension_semantics<parallel>, #tpu.dimension_semantics<arbitrary>], iteration_bounds = array<i64: 2, 1, 1>, scalar_prefetch = 0 : i64, scratch_operands = 1 : i64, tpu.core_type = #tpu.core_type<tc>, window_params = [{transform_indices = @transform_0, window_bounds = array<i64: 1, 4, 256>}, {transform_indices = @transform_1, window_bounds = array<i64: 8, 4>}, {pipeline_mode = #tpu.pipeline_mode<synchronous>, transform_indices = @transform_2, window_bounds = array<i64: 8, 1>}, {transform_indices = @transform_3, window_bounds = array<i64: 1, 8, 256>}]} {
    %c0_i32 = arith.constant 0 : i32
    %0 = arith.cmpi eq, %arg2, %c0_i32 : i32
    %1 = arith.extui %0 : i1 to i32
    %c0_i32_0 = arith.constant 0 : i32
    %2 = arith.cmpi ne, %1, %c0_i32_0 : i32
    scf.if %2 {
      %cst_11 = arith.constant 0.000000e+00 : f32
      %13 = vector.broadcast %cst_11 : f32 to vector<8x256xf32>
      %c0_12 = arith.constant 0 : index
      %c0_13 = arith.constant 0 : index
      %14 = vector.load %arg7[%c0_12, %c0_13] : memref<8x256xf32, #tpu.memory_space<vmem>>, vector<8x256xf32>
      tpu.vector_store %arg7[%c0_12, %c0_13], %13 {strides = array<i32>} : memref<8x256xf32, #tpu.memory_space<vmem>>, vector<8x256xf32>,
    } else {
    }
    %c0 = arith.constant 0 : index
    %c0_1 = arith.constant 0 : index
    %3 = vector.load %arg7[%c0, %c0_1] : memref<8x256xf32, #tpu.memory_space<vmem>>, vector<8x256xf32>
    %c0_2 = arith.constant 0 : index
    %c0_3 = arith.constant 0 : index
    %4 = vector.load %arg4[%c0_2, %c0_3] : memref<8x4xf32, #tpu.memory_space<vmem>>, vector<8x4xf32>
    %c0_4 = arith.constant 0 : index
    %c0_5 = arith.constant 0 : index
    %c0_6 = arith.constant 0 : index
    %5 = vector.load %arg3[%c0_4, %c0_5, %c0_6] : memref<1x4x256xf32, #tpu.memory_space<vmem>>, vector<1x4x256xf32>
    %6 = vector.shape_cast %5 : vector<1x4x256xf32> to vector<4x256xf32>
    %cst = arith.constant dense<0.000000e+00> : vector<8x256xf32>
    %7 = tpu.matmul %4, %6, %cst {dimension_numbers = #tpu.dot_dimension_numbers<[1], [0], [0], [1], [0, 0, 1, 1], [], []>} : vector<8x4xf32>, vector<4x256xf32>, vector<8x256xf32> -> vector<8x256xf32>
    %8 = arith.addf %3, %7 : vector<8x256xf32>
    %c0_7 = arith.constant 0 : index
    %c0_8 = arith.constant 0 : index
    %9 = vector.load %arg7[%c0_7, %c0_8] : memref<8x256xf32, #tpu.memory_space<vmem>>, vector<8x256xf32>
    tpu.vector_store %arg7[%c0_7, %c0_8], %8 {strides = array<i32>} : memref<8x256xf32, #tpu.memory_space<vmem>>, vector<8x256xf32>,
    %c0_i32_9 = arith.constant 0 : i32
    %10 = arith.cmpi eq, %arg2, %c0_i32_9 : i32
    %11 = arith.extui %10 : i1 to i32
    %c0_i32_10 = arith.constant 0 : i32
    %12 = arith.cmpi ne, %11, %c0_i32_10 : i32
    scf.if %12 {
      %c0_11 = arith.constant 0 : index
      %c0_12 = arith.constant 0 : index
      %13 = vector.load %arg7[%c0_11, %c0_12] : memref<8x256xf32, #tpu.memory_space<vmem>>, vector<8x256xf32>
      %c0_13 = arith.constant 0 : index
      %c0_14 = arith.constant 0 : index
      %14 = vector.load %arg5[%c0_13, %c0_14] : memref<8x1xf32, #tpu.memory_space<vmem>>, vector<8x1xf32>
      %15 = vector.broadcast %14 : vector<8x1xf32> to vector<8x256xf32>
      %16 = arith.addf %13, %15 : vector<8x256xf32>
      %cst_15 = arith.constant 0.000000e+00 : f32
      %17 = vector.broadcast %cst_15 : f32 to vector<8x256xf32>
      %18 = arith.maximumf %16, %17 : vector<8x256xf32>
      %c0_16 = arith.constant 0 : index
      %c0_17 = arith.constant 0 : index
      %c0_18 = arith.constant 0 : index
      %19 = vector.load %arg6[%c0_16, %c0_17, %c0_18] : memref<1x8x256xf32, #tpu.memory_space<vmem>>, vector<1x8x256xf32>
      %20 = vector.shape_cast %19 : vector<1x8x256xf32> to vector<8x256xf32>
      %21 = vector.shape_cast %18 : vector<8x256xf32> to vector<1x8x256xf32>
      tpu.vector_store %arg6[%c0_16, %c0_17, %c0_18], %21 {strides = array<i32>} : memref<1x8x256xf32, #tpu.memory_space<vmem>>, vector<1x8x256xf32>,
    } else {
    }
    return
  }
  func.func @transform_0(%arg0: i32, %arg1: i32, %arg2: i32) -> (i32, i32, i32) {
    %c0_i32 = arith.constant 0 : i32
    return %arg0, %arg2, %arg1 : i32, i32, i32
  }
  func.func @transform_1(%arg0: i32, %arg1: i32, %arg2: i32) -> (i32, i32) {
    %c0_i32 = arith.constant 0 : i32
    %c0_i32_0 = arith.constant 0 : i32
    return %c0_i32, %arg2 : i32, i32
  }
  func.func @transform_2(%arg0: i32, %arg1: i32, %arg2: i32) -> (i32, i32) {
    %c0_i32 = arith.constant 0 : i32
    %c0_i32_0 = arith.constant 0 : i32
    %c0_i32_1 = arith.constant 0 : i32
    return %c0_i32, %c0_i32_0 : i32, i32
  }
  func.func @transform_3(%arg0: i32, %arg1: i32, %arg2: i32) -> (i32, i32, i32) {
    %c0_i32 = arith.constant 0 : i32
    %c0_i32_0 = arith.constant 0 : i32
    return %arg0, %c0_i32, %arg1 : i32, i32, i32
  }
}

</mosaic_0001>

<llo_original>
// kernel: conv_relu.1
$region0: #{conv_relu.1}
  #allocation0 [shape = 'u32[]', space=smem, size = 0x4, offset = 0x4, fixed_abs, tag = 'smem constant byte address 0x4 - core index']
  #allocation1 [shape = 'u32[144,128]{1,0:T(1,128)}', space=vmem, size = 0x12000, scoped, tag = 'internal scratch']
  #allocation2 [shape = 'f32[8,256]{1,0:T(8,128)}', space=vmem, size = 0x2000, scoped, tag = 'scratch operand']
  %s0 = inlined_call_operand.vmem [shape: f32[2,4,256], index: 0, kind: input, shape index: {}]
  %s1 = inlined_call_operand.vmem [shape: f32[8,4], index: 1, kind: input, shape index: {}]
  %s2 = inlined_call_operand.vmem [shape: f32[8,1], index: 2, kind: input, shape index: {}]
  %s3 = inlined_call_operand.vmem [shape: f32[2,8,256], index: 3, kind: output, shape index: {}]
  %s4 = sld [smem:[#allocation0]]
  $region53: #{conv_relu.1} parent=0
    _
  %s6 = ssub.s32 1, %s4
  %s7 = scalar_select 0, %s6, %s4
  loop: start=0, step=1, limit=4
  $region2: #{conv_relu.1} parent=0 // loop_pre_header
    _
  $region3: #{conv_relu.1} parent=0 // loop_header
    %s9 = sphi 0, %s13
    %p10 = scmp.ge.s32.totalorder %s9, 4
    %s16 = sphi 0, %s35
    %s17 = sphi 0, %s31
    %s18 = sphi 0, %s27
    %s19 = sphi 0, %s16
    %s20 = sphi 0, %s17
    %s21 = sphi 0, %s18
    %s22 = sphi 0, %s19
    %s23 = sphi 0, %s20
    %s24 = sphi 0, %s21
    %s42 = sphi 0, %s44
    %s45 = sphi 0, %s42
    %s46 = sphi 0, %s45
    %s62 = sphi 0, %s46
    %s68 = sphi 0, %s70
    %s71 = sphi 0, %s68
    %s72 = sphi 0, %s71
    %s88 = sphi 0, %s72
    %s92 = sphi 0, %s92
    %s94 = sphi 0, %s92
    %s95 = sphi 0, %s94
    %s109 = sphi 0, %s95
    %s117 = sphi 0, %s119
    %s120 = sphi 0, %s117
    %s121 = sphi 0, %s120
    %s137 = sphi 0, %s121
  $region4: #{conv_relu.1} parent=0 // loop_header_branch
    %12 = sbr.rel (%p10) target = $region8
  $region5: #{conv_relu.1} parent=0 // loop_body
    %s14 = ssub.s32 %s9, 1
    %s15 = ssub.s32 %s9, 2
    %s25 = sadd.s32 1, %s18
    %p26 = scmp.ge.s32.totalorder %s25, 1
    %s27 = scalar_select %p26, 0, %s25
    %s28 = sadd.s32 1, %s17
    %s29 = scalar_select %p26, %s28, %s17
    %p30 = scmp.ge.s32.totalorder %s29, 1
    %s31 = scalar_select %p30, 0, %s29
    %s32 = sadd.s32 1, %s16
    %s33 = scalar_select %p30, %s32, %s16
    %p34 = scmp.ge.s32.totalorder %s33, 2
    %s35 = scalar_select %p34, 0, %s33
    %s36 = ssub.s32 %s16, %s35
    %s37 = ssub.s32 %s18, %s27
    %s38 = sor.u32 %s36, %s37
    %s39 = ssub.s32 %s17, %s31
    %s40 = sor.u32 %s38, %s39
    %p41 = scmp.eq.s32.totalorder %s40, 0
    %s43 = sadd.s32 %s42, 1
    %s44 = scalar_select %p41, %s42, %s43
    %p47 = pneg %p41
    %p48 = scmp.eq.s32.totalorder %s9, 1
    %p49 = por %p47, %p48
    %p50 = scmp.ne.s32.totalorder %s42, %s45
    %p51 = scmp.eq.s32.totalorder %s9, 0
    %p52 = por %p50, %p51
    %p53 = scmp.ne.s32.totalorder %s42, %s45
    %p54 = scmp.eq.s32.totalorder %s14, 1
    %p55 = por %p53, %p54
    %p56 = scmp.ne.s32.totalorder %s45, %s46
    %p57 = scmp.eq.s32.totalorder %s14, 0
    %p58 = por %p56, %p57
    %p59 = scmp.ne.s32.totalorder %s45, %s46
    %p60 = scmp.eq.s32.totalorder %s15, 1
    %p61 = por %p59, %p60
    %p63 = scmp.ne.s32.totalorder %s46, %s62
    %p64 = scmp.eq.s32.totalorder %s15, 0
    %p65 = por %p63, %p64
    %s66 = ssub.s32 %s18, %s27
    %p67 = scmp.eq.s32.totalorder %s66, 0
    %s69 = sadd.s32 %s68, 1
    %s70 = scalar_select %p67, %s68, %s69
    %p73 = pneg %p67
    %p74 = scmp.eq.s32.totalorder %s9, 1
    %p75 = por %p73, %p74
    %p76 = scmp.ne.s32.totalorder %s68, %s71
    %p77 = scmp.eq.s32.totalorder %s9, 0
    %p78 = por %p76, %p77
    %p79 = scmp.ne.s32.totalorder %s68, %s71
    %p80 = scmp.eq.s32.totalorder %s14, 1
    %p81 = por %p79, %p80
    %p82 = scmp.ne.s32.totalorder %s71, %s72
    %p83 = scmp.eq.s32.totalorder %s14, 0
    %p84 = por %p82, %p83
    %p85 = scmp.ne.s32.totalorder %s71, %s72
    %p86 = scmp.eq.s32.totalorder %s15, 1
    %p87 = por %p85, %p86
    %p89 = scmp.ne.s32.totalorder %s72, %s88
    %p90 = scmp.eq.s32.totalorder %s15, 0
    %p91 = por %p89, %p90
    %s93 = sadd.s32 %s92, 1
    %p96 = scmp.eq.s32.totalorder %s9, 1
    %p97 = scmp.ne.s32.totalorder %s92, %s94
    %p98 = scmp.eq.s32.totalorder %s9, 0
    %p99 = por %p97, %p98
    %p100 = scmp.ne.s32.totalorder %s92, %s94
    %p101 = scmp.eq.s32.totalorder %s14, 1
    %p102 = por %p100, %p101
    %p103 = scmp.ne.s32.totalorder %s94, %s95
    %p104 = scmp.eq.s32.totalorder %s14, 0
    %p105 = por %p103, %p104
    %p106 = scmp.ne.s32.totalorder %s94, %s95
    %p107 = scmp.eq.s32.totalorder %s15, 1
    %p108 = por %p106, %p107
    %p110 = scmp.ne.s32.totalorder %s95, %s109
    %p111 = scmp.eq.s32.totalorder %s15, 0
    %p112 = por %p110, %p111
    %s113 = ssub.s32 %s16, %s35
    %s114 = ssub.s32 %s17, %s31
    %s115 = sor.u32 %s113, %s114
    %p116 = scmp.eq.s32.totalorder %s115, 0
    %s118 = sadd.s32 %s117, 1
    %s119 = scalar_select %p116, %s117, %s118
    %p122 = pneg %p116
    %p123 = scmp.eq.s32.totalorder %s9, 1
    %p124 = por %p122, %p123
    %p125 = scmp.ne.s32.totalorder %s117, %s120
    %p126 = scmp.eq.s32.totalorder %s9, 0
    %p127 = por %p125, %p126
    %p128 = scmp.ne.s32.totalorder %s117, %s120
    %p129 = scmp.eq.s32.totalorder %s14, 1
    %p130 = por %p128, %p129
    %p131 = scmp.ne.s32.totalorder %s120, %s121
    %p132 = scmp.eq.s32.totalorder %s14, 0
    %p133 = por %p131, %p132
    %p134 = scmp.ne.s32.totalorder %s120, %s121
    %p135 = scmp.eq.s32.totalorder %s15, 1
    %p136 = por %p134, %p135
    %p138 = scmp.ne.s32.totalorder %s121, %s137
    %p139 = scmp.eq.s32.totalorder %s15, 0
    %p140 = por %p138, %p139
    %p141 = scmp.le.s32.totalorder 1, %s9
    %p142 = scmp.lt.s32.totalorder %s9, 3
    %p143 = pnand %p141, %p142
    %p144 = pneg %p143
    // Predicated region
    $region9: #{conv_relu.1} parent=5 // pred_check
      _
    $region10: #{conv_relu.1} parent=5 // pred_check_branch
      %146 = sbr.rel (%p143) target = $region12
    $region11: #{conv_relu.1} parent=5 // pred_region
      %s147 = ssub.s32 %s9, 1
      // Predicated region
      $region13: #{conv_relu.1} parent=11 // pred_check
        %p148 = pneg %p84
      $region14: #{conv_relu.1} parent=11 // pred_check_branch
        %150 = sbr.rel (%p148) target = $region16
      $region15: #{conv_relu.1} parent=11 // pred_region
        %p151 = scmp.lt.s32.totalorder %s21, 0
        %s152 = scalar_select %p151, %s21, 0
        %s153 = smul.addr %s152, 8
        %s154 = scalar_lea.vmem %s1, %s153
      $region16: #{conv_relu.1} parent=11 // pred_fallthru
        _
      // Predicated region
      $region17: #{conv_relu.1} parent=11 // pred_check
        %p155 = pneg %p105
      $region18: #{conv_relu.1} parent=11 // pred_check_branch
        %157 = sbr.rel (%p155) target = $region20
      $region19: #{conv_relu.1} parent=11 // pred_region
        _
      $region20: #{conv_relu.1} parent=11 // pred_fallthru
        _
    $region12: #{conv_relu.1} parent=5 // pred_fallthru
      _
    %p158 = scmp.lt.s32.totalorder %s9, 2
    // Predicated region
    $region21: #{conv_relu.1} parent=5 // pred_check
      %p159 = pneg %p158
    $region22: #{conv_relu.1} parent=5 // pred_check_branch
      %161 = sbr.rel (%p159) target = $region24
    $region23: #{conv_relu.1} parent=5 // pred_region
      // Predicated region
      $region25: #{conv_relu.1} parent=23 // pred_check
        %p162 = pneg %p52
      $region26: #{conv_relu.1} parent=23 // pred_check_branch
        %164 = sbr.rel (%p162) target = $region28
      $region27: #{conv_relu.1} parent=23 // pred_region
        %s165 = smul.u32 2, %s17
        %p166 = scmp.lt.s32.totalorder %s16, 1
        %s167 = scalar_select %p166, %s16, 1
        %p168 = scmp.lt.s32.totalorder %s18, 0
        %s169 = scalar_select %p168, %s18, 0
        %p170 = scmp.lt.s32.totalorder %s165, 1
        %s171 = scalar_select %p170, %s165, 1
        %s172 = smul.addr %s169, 2
        %s173 = sadd.s32 %s171, %s172
        %s174 = smul.addr %s167, 2
        %s175 = sadd.s32 %s173, %s174
        %s176 = smul.addr %s175, 4
        %s177 = scalar_lea.vmem %s0, %s176
        %s178 = smul.u32 2, %s17
      $region28: #{conv_relu.1} parent=23 // pred_fallthru
        _
    $region24: #{conv_relu.1} parent=5 // pred_fallthru
      _
    %p179 = scmp.le.s32.totalorder 1, %s9
    %p180 = scmp.lt.s32.totalorder %s9, 3
    %p181 = pnand %p179, %p180
    %p182 = pneg %p181
    // Predicated region
    $region29: #{conv_relu.1} parent=5 // pred_check
      _
    $region30: #{conv_relu.1} parent=5 // pred_check_branch
      %184 = sbr.rel (%p181) target = $region32
    $region31: #{conv_relu.1} parent=5 // pred_region
      %s185 = ssub.s32 %s9, 1
      %s186 = smul.u32 2, %s20
      %p187 = scmp.lt.s32.totalorder %s19, 1
      %s188 = scalar_select %p187, %s19, 1
      %p189 = scmp.lt.s32.totalorder %s21, 0
      %s190 = scalar_select %p189, %s21, 0
      %p191 = scmp.lt.s32.totalorder %s186, 1
      %s192 = scalar_select %p191, %s186, 1
      %s193 = smul.addr %s190, 2
      %s194 = sadd.s32 %s192, %s193
      %s195 = smul.addr %s188, 2
      %s196 = sadd.s32 %s194, %s195
      %s197 = smul.addr %s196, 4
      %s198 = scalar_lea.vmem %s0, %s197
      %p199 = pneg %p58
      %p200 = pneg %p55
      %p201 = scmp.lt.s32.totalorder %s21, 0
      %s202 = scalar_select %p201, %s21, 0
      %s203 = smul.addr %s202, 8
      %s204 = scalar_lea.vmem %s1, %s203
      %p205 = pneg %p84
      %p206 = pneg %p81
      %p207 = pneg %p105
      %p208 = pneg %p102
      %p209 = pneg %p133
      %p210 = pneg %p130
      %s211 = smul.u32 2, %s20
      %p212 = scmp.lt.s32.totalorder %s19, 1
      %s213 = scalar_select %p212, %s19, 1
      %p214 = scmp.lt.s32.totalorder %s211, 1
      %s215 = scalar_select %p214, %s211, 1
      %s216 = smul.addr %s213, 2
      %s217 = sadd.s32 %s215, %s216
      %s218 = smul.addr %s217, 8
      %s219 = scalar_lea.vmem %s3, %s218
      %s220 = smul.u32 2, %s20
      %p221 = scmp.lt.s32.totalorder %s19, 1
      %s222 = scalar_select %p221, %s19, 1
      %p223 = scmp.lt.s32.totalorder %s21, 0
      %s224 = scalar_select %p223, %s21, 0
      %p225 = scmp.lt.s32.totalorder %s220, 1
      %s226 = scalar_select %p225, %s220, 1
      %s227 = smul.addr %s224, 2
      %s228 = sadd.s32 %s226, %s227
      %s229 = smul.addr %s222, 2
      %s230 = sadd.s32 %s228, %s229
      %s231 = smul.addr %s230, 4
      %s232 = scalar_lea.vmem %s0, %s231
      %s233 = smul.u32 2, %s20
      %p234 = scmp.lt.s32.totalorder %s21, 0
      %s235 = scalar_select %p234, %s21, 0
      %s236 = smul.addr %s235, 8
      %s237 = scalar_lea.vmem %s1, %s236
      %s238 = smul.u32 2, %s20
      %p239 = scmp.lt.s32.totalorder %s19, 1
      %s240 = scalar_select %p239, %s19, 1
      %p241 = scmp.lt.s32.totalorder %s238, 1
      %s242 = scalar_select %p241, %s238, 1
      %s243 = smul.addr %s240, 2
      %s244 = sadd.s32 %s242, %s243
      %s245 = smul.addr %s244, 8
      %s246 = scalar_lea.vmem %s3, %s245
      %s247 = smul.u32 2, %s20
      %p248 = scmp.eq.s32.totalorder %s21, 0
      // Predicated region
      $region33: #{conv_relu.1} parent=31 // pred_check
        %p249 = pneg %p248
      $region34: #{conv_relu.1} parent=31 // pred_check_branch
        %251 = sbr.rel (%p249) target = $region36
      $region35: #{conv_relu.1} parent=31 // pred_region
        %252 = vst [vmem:[#allocation2] sm:$0xff] 0.0
        %253 = vst [vmem:[#allocation2 + $0x8] sm:$0xff] 0.0
      $region36: #{conv_relu.1} parent=31 // pred_fallthru
        _
      %v254 = vld [vmem:[#allocation2] sm:$0xff]
      %v255 = vld [vmem:[#allocation2 + $0x8] sm:$0xff]
      %v256 = vld [vmem:[%s237] sm:$0xff]
      %v257 = vld [vmem:[%s232] sm:$0xff]
      %v259 = vcombine.high %v257, %v257
      %vm260 = vcmask 31744
      %v262 = vsel %vm260, %v256, 0
      %vm264 = vcmask 1043456
      %v265 = vsel %vm264, %v257, 0
      %v267 = vsel %vm264, %v259, 0
      %269 = vmatprep.subr.mxu0 %v267
      %270 = vmatpush1.msra.mxu0 %v265
      %271 = vmatprep.subr.mxu0 0.0
      %272 = vmatpush1.msra.mxu0 0.0
      %273 = vmatprep.subr.mxu0 0.0
      %274 = vmatpush1.msra.mxu0 0.0
      %275 = vmatprep.subr.mxu0 0.0
      %276 = vmatpush1.msra.mxu0 0.0
      %277 = vmatprep.subr.mxu0 0.0
      %278 = vmatpush1.msra.mxu0 0.0
      %279 = vmatprep.subr.mxu0 0.0
      %280 = vmatpush1.msra.mxu0 0.0
      %281 = vmatprep.subr.mxu0 0.0
      %282 = vmatpush1.msra.mxu0 0.0
      %283 = vmatprep.subr.mxu0 0.0
      %284 = vmatpush1.msra.mxu0 0.0
      %285 = vmatprep.subr.mxu0 0.0
      %286 = vmatpush1.msra.mxu0 0.0
      %287 = vmatprep.subr.mxu0 0.0
      %288 = vmatpush1.msra.mxu0 0.0
      %289 = vmatprep.subr.mxu0 0.0
      %290 = vmatpush1.msra.mxu0 0.0
      %291 = vmatprep.subr.mxu0 0.0
      %292 = vmatpush1.msra.mxu0 0.0
      %293 = vmatprep.subr.mxu0 0.0
      %294 = vmatpush1.msra.mxu0 0.0
      %295 = vmatprep.subr.mxu0 0.0
      %296 = vmatpush1.msra.mxu0 0.0
      %297 = vmatprep.subr.mxu0 0.0
      %298 = vmatpush1.msra.mxu0 0.0
      %299 = vmatprep.subr.mxu0 0.0
      %300 = vmatpush1.msra.mxu0 0.0
      %301 = vmatprep.subr.mxu0 0.0
      %302 = vmatpush1.msra.mxu0 0.0
      %303 = vmatprep.subr.mxu0 0.0
      %304 = vmatpush1.msra.mxu0 0.0
      %305 = vmatprep.subr.mxu0 0.0
      %306 = vmatpush1.msra.mxu0 0.0
      %307 = vmatprep.subr.mxu0 0.0
      %308 = vmatpush1.msra.mxu0 0.0
      %309 = vmatprep.subr.mxu0 0.0
      %310 = vmatpush1.msra.mxu0 0.0
      %311 = vmatprep.subr.mxu0 0.0
      %312 = vmatpush1.msra.mxu0 0.0
      %313 = vmatprep.subr.mxu0 0.0
      %314 = vmatpush1.msra.mxu0 0.0
      %315 = vmatprep.subr.mxu0 0.0
      %316 = vmatpush1.msra.mxu0 0.0
      %317 = vmatprep.subr.mxu0 0.0
      %318 = vmatpush1.msra.mxu0 0.0
      %319 = vmatprep.subr.mxu0 0.0
      %320 = vmatpush1.msra.mxu0 0.0
      %321 = vmatprep.subr.mxu0 0.0
      %322 = vmatpush1.msra.mxu0 0.0
      %323 = vmatprep.subr.mxu0 0.0
      %324 = vmatpush1.msra.mxu0 0.0
      %325 = vmatprep.subr.mxu0 0.0
      %326 = vmatpush1.msra.mxu0 0.0
      %327 = vmatprep.subr.mxu0 0.0
      %328 = vmatpush1.msra.mxu0 0.0
      %329 = vmatprep.subr.mxu0 0.0
      %330 = vmatpush1.msra.mxu0 0.0
      %331 = vmatprep.subr.mxu0 0.0
      %332 = vmatpush1.msra.mxu0 0.0
      %333 = vmatprep.mubr.f32.mxu0 0.0
      %334 = vmatmul.mubr.f32.gmra.mrb[0].mxu0 %v262
      %v335 = vpop.f32.mrb[0].mxu0
      %v336 = vadd.f32 0.0, %v335
      %v337 = vpop.f32.mrb[0].mxu0
      %v338 = vadd.f32 0.0, %v337
      %339 = vdwg.mxu0
      %v340 = vadd.f32 %v254, %v336
      %v341 = vadd.f32 %v255, %v338
      %342 = vst [vmem:[#allocation2] sm:$0xff] %v340
      %343 = vst [vmem:[#allocation2 + $0x8] sm:$0xff] %v341
      // Predicated region
      $region37: #{conv_relu.1} parent=31 // pred_check
        %p344 = pneg %p248
      $region38: #{conv_relu.1} parent=31 // pred_check_branch
        %346 = sbr.rel (%p344) target = $region40
      $region39: #{conv_relu.1} parent=31 // pred_region
        %v347 = vld [vmem:[#allocation2] sm:$0xff]
        %v348 = vld [vmem:[#allocation2 + $0x8] sm:$0xff]
        %v349 = vld [vmem:[%s2] sm:$0xff]
        %351 = vset.pattern.permute.xlu0 0
        %352 = vperm.xlu0 %351, %v349
        %v353 = vpop.permute.xlu0 %352
        %v355 = vadd.f32 %v347, %v353
        %v356 = vadd.f32 %v348, %v353
        %v357 = vmax.f32 %v355, 0.0
        %v358 = vmax.f32 %v356, 0.0
        %359 = vst [vmem:[%s246] sm:$0xff] %v357
        %360 = vst [vmem:[%s246 + $0x8] sm:$0xff] %v358
      $region40: #{conv_relu.1} parent=31 // pred_fallthru
        _
      %s361 = smul.u32 2, %s20
      %p362 = scmp.lt.s32.totalorder %s19, 1
      %s363 = scalar_select %p362, %s19, 1
      %p364 = scmp.lt.s32.totalorder %s361, 1
      %s365 = scalar_select %p364, %s361, 1
      %s366 = smul.addr %s363, 2
      %s367 = sadd.s32 %s365, %s366
      %s368 = smul.addr %s367, 8
      %s369 = scalar_lea.vmem %s3, %s368
      // Predicated region
      $region41: #{conv_relu.1} parent=31 // pred_check
        %p370 = pneg %p130
      $region42: #{conv_relu.1} parent=31 // pred_check_branch
        %372 = sbr.rel (%p370) target = $region44
      $region43: #{conv_relu.1} parent=31 // pred_region
        %s373 = smul.u32 2, %s20
      $region44: #{conv_relu.1} parent=31 // pred_fallthru
        _
    $region32: #{conv_relu.1} parent=5 // pred_fallthru
      _
    %p374 = scmp.le.s32.totalorder 2, %s9
    // Predicated region
    $region45: #{conv_relu.1} parent=5 // pred_check
      %p375 = pneg %p374
    $region46: #{conv_relu.1} parent=5 // pred_check_branch
      %377 = sbr.rel (%p375) target = $region48
    $region47: #{conv_relu.1} parent=5 // pred_region
      %s378 = ssub.s32 %s9, 2
      // Predicated region
      $region49: #{conv_relu.1} parent=47 // pred_check
        %p379 = pneg %p136
      $region50: #{conv_relu.1} parent=47 // pred_check_branch
        %381 = sbr.rel (%p379) target = $region52
      $region51: #{conv_relu.1} parent=47 // pred_region
        %s382 = smul.u32 2, %s23
        %p383 = scmp.lt.s32.totalorder %s22, 1
        %s384 = scalar_select %p383, %s22, 1
        %p385 = scmp.lt.s32.totalorder %s382, 1
        %s386 = scalar_select %p385, %s382, 1
        %s387 = smul.addr %s384, 2
        %s388 = sadd.s32 %s386, %s387
        %s389 = smul.addr %s388, 8
        %s390 = scalar_lea.vmem %s3, %s389
      $region52: #{conv_relu.1} parent=47 // pred_fallthru
        _
    $region48: #{conv_relu.1} parent=5 // pred_fallthru
      _
  $region6: #{conv_relu.1} parent=0 // loop_footer
    %s13 = sadd.s32 1, %s9
  $region7: #{conv_relu.1} parent=0 // loop_footer_branch
    %8 = sbr.rel target = $region3
  $region8: #{conv_relu.1} parent=0 // loop_exit
    _

</llo_original>
